<compile_context>
chip_gen: v7x
topology: tpu7x:2x2x1
jax: 0.10.0
libtpu: 0.0.40
codegen_flags: <defaults>
</compile_context>

<pallas_src>
import jax
import jax.numpy as jnp
from jax.experimental import pallas as pl
from jax.experimental.pallas import tpu as pltpu


def attention_kernel(hidden_ref, enc_ref, mask_ref,
                     wh_ref, we_ref, b_ref, v_ref, out_ref):
    # hidden_ref: (TB, dec_hid)           decoder hidden rows for this batch tile
    # enc_ref:    (src_len, TB, enc2)     encoder outputs, native [S, B, E] layout
    # mask_ref:   (TB, S_pad)             int mask, 0 == PAD (padding cols are 0)
    # wh_ref:     (dec_hid, dec_hid)      attn weight slice for `hidden`, transposed
    # we_ref:     (enc2, dec_hid)         attn weight slice for encoder outs, transposed
    # b_ref:      (1, dec_hid)            attn bias
    # v_ref:      (1, dec_hid)            v weight (row vector)
    # out_ref:    (TB, S_pad)             softmax attention scores (lane-dense)
    s_len, tb, _ = enc_ref.shape
    s_pad = out_ref.shape[1]

    # One matmul for all TB rows of the decoder hidden state (hoisted out of
    # the source-position loop), bias folded in once.
    h_proj = jnp.dot(hidden_ref[...], wh_ref[...],
                     preferred_element_type=jnp.float32)            # (TB, dec_hid)
    hb = h_proj + b_ref[...]                                        # (TB, dec_hid)

    we = we_ref[...]                                                # (enc2, dec_hid)
    v = v_ref[...]                                                  # (1, dec_hid)

    # Unrolled loop over source positions. Each iteration:
    #   (TB, enc2) @ (enc2, dec_hid) matmul batched over the whole batch tile,
    #   VPU tanh, then a multiply + lane reduction against v (keeps the MXU
    #   free of 1-row matmuls).  Column s of the score matrix comes out
    #   directly in (TB, 1) shape, so no relayout is needed.
    cols = []
    for s in range(s_len):
        enc_s = enc_ref[s]                                          # (TB, enc2)
        e_proj = jnp.dot(enc_s, we,
                         preferred_element_type=jnp.float32)        # (TB, dec_hid)
        energy = jnp.tanh(e_proj + hb)                              # (TB, dec_hid)
        cols.append(jnp.sum(energy * v, axis=-1, keepdims=True))    # (TB, 1)
    if s_pad > s_len:
        cols.append(jnp.zeros((tb, s_pad - s_len), jnp.float32))    # lane padding
    scores = jnp.concatenate(cols, axis=1)                          # (TB, S_pad)

    # masked_fill(mask == 0, -1e10); padded columns have mask == 0 as well.
    scores = jnp.where(mask_ref[...] == 0, jnp.float32(-1e10), scores)

    # softmax over src_len (lane axis); reciprocal goes to the EUP slot.
    m = jnp.max(scores, axis=1, keepdims=True)
    e = jnp.exp(scores - m)
    denom = jnp.sum(e, axis=1, keepdims=True)
    out_ref[...] = (e * pl.reciprocal(denom, approx=True)).astype(out_ref.dtype)


def _pick_batch_tile(batch, src_len, enc2, vmem_budget_bytes=24 * 1024 * 1024):
    """Pick TB: as many batch rows per grid step as fit a modest VMEM budget.

    Keeps the double-buffered encoder block (2 * TB * src_len * enc2 * 4B)
    under `vmem_budget_bytes` (conservative for v7x's 64 MiB VMEM).  TB is the
    full batch when it fits, otherwise a multiple of 8 dividing batch (to
    satisfy the (8,128) block constraints on the second-minor dim).
    """
    per_row = 2 * src_len * enc2 * 4
    cap = max(8, min(128, vmem_budget_bytes // max(per_row, 1)))
    if batch <= cap:
        return batch
    tb = (cap // 8) * 8
    while tb >= 8:
        if batch % tb == 0:
            return tb
        tb -= 8
    return batch


def attention_forward(hidden, encoder_outputs, mask, attn_w, attn_b, v_w):
    """hidden: [B, dec_hid], encoder_outputs: [src_len, B, enc2], mask: [B, src_len].

    attn_w: [dec_hid, enc2 + dec_hid]  (PyTorch nn.Linear weight layout: [out, in])
    attn_b: [dec_hid]
    v_w:    [1, dec_hid]
    """
    src_len, batch, enc2 = encoder_outputs.shape
    dec_hid = hidden.shape[1]

    # Lane-dense output: pad src_len up to a multiple of 128 (mask pads with 0
    # so the padded positions get -1e10 and contribute nothing to the softmax).
    s_pad = ((src_len + 127) // 128) * 128

    tb = _pick_batch_tile(batch, src_len, enc2)
    nb = batch // tb if batch % tb == 0 else 1
    if nb == 1:
        tb = batch

    # Tiny parameter reshapes only (no transform of the big encoder tensor).
    wh_t = attn_w[:, :dec_hid].T                                  # [dec_hid, dec_hid]
    we_t = attn_w[:, dec_hid:].T                                  # [enc2, dec_hid]
    b2d = attn_b.reshape(1, dec_hid)                              # [1, dec_hid]
    v_row = v_w.reshape(1, dec_hid)                               # [1, dec_hid]
    mask_p = jnp.pad(mask.astype(jnp.int32),
                     ((0, 0), (0, s_pad - src_len)))              # [B, s_pad]

    out_p = pl.pallas_call(
        attention_kernel,
        out_shape=jax.ShapeDtypeStruct((batch, s_pad), jnp.float32),
        grid_spec=pltpu.PrefetchScalarGridSpec(
            num_scalar_prefetch=0,
            grid=(nb,),
            in_specs=[
                pl.BlockSpec((tb, dec_hid), lambda i: (i, 0)),            # hidden
                pl.BlockSpec((src_len, tb, enc2), lambda i: (0, i, 0)),   # enc (native layout)
                pl.BlockSpec((tb, s_pad), lambda i: (i, 0)),              # mask (padded)
                pl.BlockSpec((dec_hid, dec_hid), lambda i: (0, 0)),       # Wh^T
                pl.BlockSpec((enc2, dec_hid), lambda i: (0, 0)),          # We^T
                pl.BlockSpec((1, dec_hid), lambda i: (0, 0)),             # bias
                pl.BlockSpec((1, dec_hid), lambda i: (0, 0)),             # v
            ],
            out_specs=pl.BlockSpec((tb, s_pad), lambda i: (i, 0)),
        ),
        compiler_params=pltpu.CompilerParams(
            dimension_semantics=("parallel",)),
    )(hidden, encoder_outputs, mask_p, wh_t, we_t, b2d, v_row)

    return out_p[:, :src_len]


def attention_reference(hidden, encoder_outputs, mask, attn_w, attn_b, v_w):
    """Pure-JAX reference mirroring the PyTorch attention forward exactly."""
    src_len = encoder_outputs.shape[0]
    h = jnp.repeat(hidden[:, None, :], src_len, axis=1)          # [B, src_len, dec_hid]
    enc = jnp.transpose(encoder_outputs, (1, 0, 2))              # [B, src_len, enc2]
    cat = jnp.concatenate([h, enc], axis=2)
    energy = jnp.tanh(cat @ attn_w.T + attn_b)
    attention = (energy @ v_w.T)[..., 0]                         # [B, src_len]
    attention = jnp.where(mask == 0, -1e10, attention)
    return jax.nn.softmax(attention, axis=1)


if __name__ == "__main__":
    # Small shapes consistent with the module
    batch, src_len = 2, 8
    enc_hid_dim, dec_hid_dim = 16, 32
    enc2 = enc_hid_dim * 2

    key = jax.random.PRNGKey(0)
    k1, k2, k3, k4, k5, k6 = jax.random.split(key, 6)

    hidden = jax.random.normal(k1, (batch, dec_hid_dim), dtype=jnp.float32)
    encoder_outputs = jax.random.normal(k2, (src_len, batch, enc2), dtype=jnp.float32)
    # mask with some zero (PAD) positions
    mask = (jax.random.uniform(k3, (batch, src_len)) > 0.25).astype(jnp.int32)
    mask = mask.at[:, 0].set(1)  # ensure at least one valid position per row

    # Deterministic parameter init (nn.Linear-like uniform)
    in_dim = enc2 + dec_hid_dim
    bound_attn = 1.0 / jnp.sqrt(in_dim)
    attn_w = jax.random.uniform(k4, (dec_hid_dim, in_dim), jnp.float32,
                                -bound_attn, bound_attn)
    attn_b = jax.random.uniform(k5, (dec_hid_dim,), jnp.float32,
                                -bound_attn, bound_attn)
    bound_v = 1.0 / jnp.sqrt(dec_hid_dim)
    v_w = jax.random.uniform(k6, (1, dec_hid_dim), jnp.float32, -bound_v, bound_v)

    out = attention_forward(hidden, encoder_outputs, mask, attn_w, attn_b, v_w)
    out = jax.block_until_ready(out)

    ref = attention_reference(hidden, encoder_outputs, mask, attn_w, attn_b, v_w)
    assert out.shape == (batch, src_len)
    # slightly looser tolerance: softmax epilogue uses the EUP approx reciprocal
    assert jnp.allclose(out, ref, atol=1e-3, rtol=1e-3), "mismatch vs reference"

    print("KERNEL_OK")
</pallas_src>

<mosaic_0001>
module attributes {stable_mosaic.version = 11 : i64} {
  func.func @attention_kernel(%arg0: i32, %arg1: memref<2x32xf32, #tpu.memory_space<vmem>>, %arg2: memref<8x2x32xf32, #tpu.memory_space<vmem>>, %arg3: memref<2x128xi32, #tpu.memory_space<vmem>>, %arg4: memref<32x32xf32, #tpu.memory_space<vmem>>, %arg5: memref<32x32xf32, #tpu.memory_space<vmem>>, %arg6: memref<1x32xf32, #tpu.memory_space<vmem>>, %arg7: memref<1x32xf32, #tpu.memory_space<vmem>>, %arg8: memref<2x128xf32, #tpu.memory_space<vmem>>) attributes {dimension_semantics = [#tpu.dimension_semantics<parallel>], iteration_bounds = array<i64: 1>, scalar_prefetch = 0 : i64, scratch_operands = 0 : i64, tpu.core_type = #tpu.core_type<tc>, window_params = [{transform_indices = @transform_0, window_bounds = array<i64: 2, 32>}, {transform_indices = @transform_1, window_bounds = array<i64: 8, 2, 32>}, {transform_indices = @transform_2, window_bounds = array<i64: 2, 128>}, {pipeline_mode = #tpu.pipeline_mode<synchronous>, transform_indices = @transform_3, window_bounds = array<i64: 32, 32>}, {pipeline_mode = #tpu.pipeline_mode<synchronous>, transform_indices = @transform_4, window_bounds = array<i64: 32, 32>}, {pipeline_mode = #tpu.pipeline_mode<synchronous>, transform_indices = @transform_5, window_bounds = array<i64: 1, 32>}, {pipeline_mode = #tpu.pipeline_mode<synchronous>, transform_indices = @transform_6, window_bounds = array<i64: 1, 32>}, {transform_indices = @transform_7, window_bounds = array<i64: 2, 128>}]} {
    %c0 = arith.constant 0 : index
    %c0_0 = arith.constant 0 : index
    %0 = vector.load %arg1[%c0, %c0_0] : memref<2x32xf32, #tpu.memory_space<vmem>>, vector<2x32xf32>
    %c0_1 = arith.constant 0 : index
    %c0_2 = arith.constant 0 : index
    %1 = vector.load %arg4[%c0_1, %c0_2] : memref<32x32xf32, #tpu.memory_space<vmem>>, vector<32x32xf32>
    %cst = arith.constant dense<0.000000e+00> : vector<2x32xf32>
    %2 = tpu.matmul %0, %1, %cst {dimension_numbers = #tpu.dot_dimension_numbers<[1], [0], [0], [1], [0, 0, 1, 1], [], []>} : vector<2x32xf32>, vector<32x32xf32>, vector<2x32xf32> -> vector<2x32xf32>
    %c0_3 = arith.constant 0 : index
    %c0_4 = arith.constant 0 : index
    %3 = vector.load %arg6[%c0_3, %c0_4] : memref<1x32xf32, #tpu.memory_space<vmem>>, vector<1x32xf32>
    %4 = vector.broadcast %3 : vector<1x32xf32> to vector<2x32xf32>
    %5 = arith.addf %2, %4 : vector<2x32xf32>
    %c0_5 = arith.constant 0 : index
    %c0_6 = arith.constant 0 : index
    %6 = vector.load %arg5[%c0_5, %c0_6] : memref<32x32xf32, #tpu.memory_space<vmem>>, vector<32x32xf32>
    %c0_7 = arith.constant 0 : index
    %c0_8 = arith.constant 0 : index
    %7 = vector.load %arg7[%c0_7, %c0_8] : memref<1x32xf32, #tpu.memory_space<vmem>>, vector<1x32xf32>
    %c0_9 = arith.constant 0 : index
    %c0_10 = arith.constant 0 : index
    %c0_11 = arith.constant 0 : index
    %8 = vector.load %arg2[%c0_9, %c0_10, %c0_11] : memref<8x2x32xf32, #tpu.memory_space<vmem>>, vector<1x2x32xf32>
    %9 = vector.shape_cast %8 : vector<1x2x32xf32> to vector<2x32xf32>
    %cst_12 = arith.constant dense<0.000000e+00> : vector<2x32xf32>
    %10 = tpu.matmul %9, %6, %cst_12 {dimension_numbers = #tpu.dot_dimension_numbers<[1], [0], [0], [1], [0, 0, 1, 1], [], []>} : vector<2x32xf32>, vector<32x32xf32>, vector<2x32xf32> -> vector<2x32xf32>
    %11 = arith.addf %10, %5 : vector<2x32xf32>
    %12 = math.tanh %11 : vector<2x32xf32>
    %13 = vector.broadcast %7 : vector<1x32xf32> to vector<2x32xf32>
    %14 = arith.mulf %12, %13 : vector<2x32xf32>
    %cst_13 = arith.constant dense<0.000000e+00> : vector<2xf32>
    %15 = vector.multi_reduction <add>, %14, %cst_13 [1] : vector<2x32xf32> to vector<2xf32>
    %16 = vector.shape_cast %15 : vector<2xf32> to vector<2x1xf32>
    %c1 = arith.constant 1 : index
    %c0_14 = arith.constant 0 : index
    %c0_15 = arith.constant 0 : index
    %17 = vector.load %arg2[%c1, %c0_14, %c0_15] : memref<8x2x32xf32, #tpu.memory_space<vmem>>, vector<1x2x32xf32>
    %18 = vector.shape_cast %17 : vector<1x2x32xf32> to vector<2x32xf32>
    %cst_16 = arith.constant dense<0.000000e+00> : vector<2x32xf32>
    %19 = tpu.matmul %18, %6, %cst_16 {dimension_numbers = #tpu.dot_dimension_numbers<[1], [0], [0], [1], [0, 0, 1, 1], [], []>} : vector<2x32xf32>, vector<32x32xf32>, vector<2x32xf32> -> vector<2x32xf32>
    %20 = arith.addf %19, %5 : vector<2x32xf32>
    %21 = math.tanh %20 : vector<2x32xf32>
    %22 = vector.broadcast %7 : vector<1x32xf32> to vector<2x32xf32>
    %23 = arith.mulf %21, %22 : vector<2x32xf32>
    %cst_17 = arith.constant dense<0.000000e+00> : vector<2xf32>
    %24 = vector.multi_reduction <add>, %23, %cst_17 [1] : vector<2x32xf32> to vector<2xf32>
    %25 = vector.shape_cast %24 : vector<2xf32> to vector<2x1xf32>
    %c2 = arith.constant 2 : index
    %c0_18 = arith.constant 0 : index
    %c0_19 = arith.constant 0 : index
    %26 = vector.load %arg2[%c2, %c0_18, %c0_19] : memref<8x2x32xf32, #tpu.memory_space<vmem>>, vector<1x2x32xf32>
    %27 = vector.shape_cast %26 : vector<1x2x32xf32> to vector<2x32xf32>
    %cst_20 = arith.constant dense<0.000000e+00> : vector<2x32xf32>
    %28 = tpu.matmul %27, %6, %cst_20 {dimension_numbers = #tpu.dot_dimension_numbers<[1], [0], [0], [1], [0, 0, 1, 1], [], []>} : vector<2x32xf32>, vector<32x32xf32>, vector<2x32xf32> -> vector<2x32xf32>
    %29 = arith.addf %28, %5 : vector<2x32xf32>
    %30 = math.tanh %29 : vector<2x32xf32>
    %31 = vector.broadcast %7 : vector<1x32xf32> to vector<2x32xf32>
    %32 = arith.mulf %30, %31 : vector<2x32xf32>
    %cst_21 = arith.constant dense<0.000000e+00> : vector<2xf32>
    %33 = vector.multi_reduction <add>, %32, %cst_21 [1] : vector<2x32xf32> to vector<2xf32>
    %34 = vector.shape_cast %33 : vector<2xf32> to vector<2x1xf32>
    %c3 = arith.constant 3 : index
    %c0_22 = arith.constant 0 : index
    %c0_23 = arith.constant 0 : index
    %35 = vector.load %arg2[%c3, %c0_22, %c0_23] : memref<8x2x32xf32, #tpu.memory_space<vmem>>, vector<1x2x32xf32>
    %36 = vector.shape_cast %35 : vector<1x2x32xf32> to vector<2x32xf32>
    %cst_24 = arith.constant dense<0.000000e+00> : vector<2x32xf32>
    %37 = tpu.matmul %36, %6, %cst_24 {dimension_numbers = #tpu.dot_dimension_numbers<[1], [0], [0], [1], [0, 0, 1, 1], [], []>} : vector<2x32xf32>, vector<32x32xf32>, vector<2x32xf32> -> vector<2x32xf32>
    %38 = arith.addf %37, %5 : vector<2x32xf32>
    %39 = math.tanh %38 : vector<2x32xf32>
    %40 = vector.broadcast %7 : vector<1x32xf32> to vector<2x32xf32>
    %41 = arith.mulf %39, %40 : vector<2x32xf32>
    %cst_25 = arith.constant dense<0.000000e+00> : vector<2xf32>
    %42 = vector.multi_reduction <add>, %41, %cst_25 [1] : vector<2x32xf32> to vector<2xf32>
    %43 = vector.shape_cast %42 : vector<2xf32> to vector<2x1xf32>
    %c4 = arith.constant 4 : index
    %c0_26 = arith.constant 0 : index
    %c0_27 = arith.constant 0 : index
    %44 = vector.load %arg2[%c4, %c0_26, %c0_27] : memref<8x2x32xf32, #tpu.memory_space<vmem>>, vector<1x2x32xf32>
    %45 = vector.shape_cast %44 : vector<1x2x32xf32> to vector<2x32xf32>
    %cst_28 = arith.constant dense<0.000000e+00> : vector<2x32xf32>
    %46 = tpu.matmul %45, %6, %cst_28 {dimension_numbers = #tpu.dot_dimension_numbers<[1], [0], [0], [1], [0, 0, 1, 1], [], []>} : vector<2x32xf32>, vector<32x32xf32>, vector<2x32xf32> -> vector<2x32xf32>
    %47 = arith.addf %46, %5 : vector<2x32xf32>
    %48 = math.tanh %47 : vector<2x32xf32>
    %49 = vector.broadcast %7 : vector<1x32xf32> to vector<2x32xf32>
    %50 = arith.mulf %48, %49 : vector<2x32xf32>
    %cst_29 = arith.constant dense<0.000000e+00> : vector<2xf32>
    %51 = vector.multi_reduction <add>, %50, %cst_29 [1] : vector<2x32xf32> to vector<2xf32>
    %52 = vector.shape_cast %51 : vector<2xf32> to vector<2x1xf32>
    %c5 = arith.constant 5 : index
    %c0_30 = arith.constant 0 : index
    %c0_31 = arith.constant 0 : index
    %53 = vector.load %arg2[%c5, %c0_30, %c0_31] : memref<8x2x32xf32, #tpu.memory_space<vmem>>, vector<1x2x32xf32>
    %54 = vector.shape_cast %53 : vector<1x2x32xf32> to vector<2x32xf32>
    %cst_32 = arith.constant dense<0.000000e+00> : vector<2x32xf32>
    %55 = tpu.matmul %54, %6, %cst_32 {dimension_numbers = #tpu.dot_dimension_numbers<[1], [0], [0], [1], [0, 0, 1, 1], [], []>} : vector<2x32xf32>, vector<32x32xf32>, vector<2x32xf32> -> vector<2x32xf32>
    %56 = arith.addf %55, %5 : vector<2x32xf32>
    %57 = math.tanh %56 : vector<2x32xf32>
    %58 = vector.broadcast %7 : vector<1x32xf32> to vector<2x32xf32>
    %59 = arith.mulf %57, %58 : vector<2x32xf32>
    %cst_33 = arith.constant dense<0.000000e+00> : vector<2xf32>
    %60 = vector.multi_reduction <add>, %59, %cst_33 [1] : vector<2x32xf32> to vector<2xf32>
    %61 = vector.shape_cast %60 : vector<2xf32> to vector<2x1xf32>
    %c6 = arith.constant 6 : index
    %c0_34 = arith.constant 0 : index
    %c0_35 = arith.constant 0 : index
    %62 = vector.load %arg2[%c6, %c0_34, %c0_35] : memref<8x2x32xf32, #tpu.memory_space<vmem>>, vector<1x2x32xf32>
    %63 = vector.shape_cast %62 : vector<1x2x32xf32> to vector<2x32xf32>
    %cst_36 = arith.constant dense<0.000000e+00> : vector<2x32xf32>
    %64 = tpu.matmul %63, %6, %cst_36 {dimension_numbers = #tpu.dot_dimension_numbers<[1], [0], [0], [1], [0, 0, 1, 1], [], []>} : vector<2x32xf32>, vector<32x32xf32>, vector<2x32xf32> -> vector<2x32xf32>
    %65 = arith.addf %64, %5 : vector<2x32xf32>
    %66 = math.tanh %65 : vector<2x32xf32>
    %67 = vector.broadcast %7 : vector<1x32xf32> to vector<2x32xf32>
    %68 = arith.mulf %66, %67 : vector<2x32xf32>
    %cst_37 = arith.constant dense<0.000000e+00> : vector<2xf32>
    %69 = vector.multi_reduction <add>, %68, %cst_37 [1] : vector<2x32xf32> to vector<2xf32>
    %70 = vector.shape_cast %69 : vector<2xf32> to vector<2x1xf32>
    %c7 = arith.constant 7 : index
    %c0_38 = arith.constant 0 : index
    %c0_39 = arith.constant 0 : index
    %71 = vector.load %arg2[%c7, %c0_38, %c0_39] : memref<8x2x32xf32, #tpu.memory_space<vmem>>, vector<1x2x32xf32>
    %72 = vector.shape_cast %71 : vector<1x2x32xf32> to vector<2x32xf32>
    %cst_40 = arith.constant dense<0.000000e+00> : vector<2x32xf32>
    %73 = tpu.matmul %72, %6, %cst_40 {dimension_numbers = #tpu.dot_dimension_numbers<[1], [0], [0], [1], [0, 0, 1, 1], [], []>} : vector<2x32xf32>, vector<32x32xf32>, vector<2x32xf32> -> vector<2x32xf32>
    %74 = arith.addf %73, %5 : vector<2x32xf32>
    %75 = math.tanh %74 : vector<2x32xf32>
    %76 = vector.broadcast %7 : vector<1x32xf32> to vector<2x32xf32>
    %77 = arith.mulf %75, %76 : vector<2x32xf32>
    %cst_41 = arith.constant dense<0.000000e+00> : vector<2xf32>
    %78 = vector.multi_reduction <add>, %77, %cst_41 [1] : vector<2x32xf32> to vector<2xf32>
    %79 = vector.shape_cast %78 : vector<2xf32> to vector<2x1xf32>
    %cst_42 = arith.constant 0.000000e+00 : f32
    %80 = vector.broadcast %cst_42 : f32 to vector<2x120xf32>
    %81 = tpu.concatenate %16, %25, %34, %43, %52, %61, %70, %79, %80 in 1 : vector<2x1xf32>, vector<2x1xf32>, vector<2x1xf32>, vector<2x1xf32>, vector<2x1xf32>, vector<2x1xf32>, vector<2x1xf32>, vector<2x1xf32>, vector<2x120xf32> -> vector<2x128xf32>
    %c0_43 = arith.constant 0 : index
    %c0_44 = arith.constant 0 : index
    %82 = vector.load %arg3[%c0_43, %c0_44] : memref<2x128xi32, #tpu.memory_space<vmem>>, vector<2x128xi32>
    %c0_i32 = arith.constant 0 : i32
    %83 = vector.broadcast %c0_i32 : i32 to vector<2x128xi32>
    %84 = arith.cmpi eq, %82, %83 : vector<2x128xi32>
    %cst_45 = arith.constant -1.000000e+10 : f32
    %85 = vector.broadcast %cst_45 : f32 to vector<2x128xf32>
    %86 = arith.select %84, %85, %81 : vector<2x128xi1>, vector<2x128xf32>
    %cst_46 = arith.constant dense<0xFF800000> : vector<2xf32>
    %87 = vector.multi_reduction <maximumf>, %86, %cst_46 [1] : vector<2x128xf32> to vector<2xf32>
    %88 = vector.shape_cast %87 : vector<2xf32> to vector<2x1xf32>
    %89 = vector.broadcast %88 : vector<2x1xf32> to vector<2x128xf32>
    %90 = arith.subf %86, %89 : vector<2x128xf32>
    %91 = math.exp %90 : vector<2x128xf32>
    %cst_47 = arith.constant dense<0.000000e+00> : vector<2xf32>
    %92 = vector.multi_reduction <add>, %91, %cst_47 [1] : vector<2x128xf32> to vector<2xf32>
    %93 = vector.shape_cast %92 : vector<2xf32> to vector<2x1xf32>
    %94 = tpu.reciprocal %93 {approx = true} : vector<2x1xf32> -> vector<2x1xf32>
    %95 = vector.broadcast %94 : vector<2x1xf32> to vector<2x128xf32>
    %96 = arith.mulf %91, %95 : vector<2x128xf32>
    %c0_48 = arith.constant 0 : index
    %c0_49 = arith.constant 0 : index
    %97 = vector.load %arg8[%c0_48, %c0_49] : memref<2x128xf32, #tpu.memory_space<vmem>>, vector<2x128xf32>
    tpu.vector_store %arg8[%c0_48, %c0_49], %96 {strides = array<i32>} : memref<2x128xf32, #tpu.memory_space<vmem>>, vector<2x128xf32>,
    return
  }
  func.func @transform_0(%arg0: i32) -> (i32, i32) {
    %c0_i32 = arith.constant 0 : i32
    %c0_i32_0 = arith.constant 0 : i32
    return %arg0, %c0_i32 : i32, i32
  }
  func.func @transform_1(%arg0: i32) -> (i32, i32, i32) {
    %c0_i32 = arith.constant 0 : i32
    %c0_i32_0 = arith.constant 0 : i32
    %c0_i32_1 = arith.constant 0 : i32
    return %c0_i32, %arg0, %c0_i32_0 : i32, i32, i32
  }
  func.func @transform_2(%arg0: i32) -> (i32, i32) {
    %c0_i32 = arith.constant 0 : i32
    %c0_i32_0 = arith.constant 0 : i32
    return %arg0, %c0_i32 : i32, i32
  }
  func.func @transform_3(%arg0: i32) -> (i32, i32) {
    %c0_i32 = arith.constant 0 : i32
    %c0_i32_0 = arith.constant 0 : i32
    %c0_i32_1 = arith.constant 0 : i32
    return %c0_i32, %c0_i32_0 : i32, i32
  }
  func.func @transform_4(%arg0: i32) -> (i32, i32) {
    %c0_i32 = arith.constant 0 : i32
    %c0_i32_0 = arith.constant 0 : i32
    %c0_i32_1 = arith.constant 0 : i32
    return %c0_i32, %c0_i32_0 : i32, i32
  }
  func.func @transform_5(%arg0: i32) -> (i32, i32) {
    %c0_i32 = arith.constant 0 : i32
    %c0_i32_0 = arith.constant 0 : i32
    %c0_i32_1 = arith.constant 0 : i32
    return %c0_i32, %c0_i32_0 : i32, i32
  }
  func.func @transform_6(%arg0: i32) -> (i32, i32) {
    %c0_i32 = arith.constant 0 : i32
    %c0_i32_0 = arith.constant 0 : i32
    %c0_i32_1 = arith.constant 0 : i32
    return %c0_i32, %c0_i32_0 : i32, i32
  }
  func.func @transform_7(%arg0: i32) -> (i32, i32) {
    %c0_i32 = arith.constant 0 : i32
    %c0_i32_0 = arith.constant 0 : i32
    return %arg0, %c0_i32 : i32, i32
  }
}

</mosaic_0001>

<llo_original>
// kernel: tpu_custom_call.1
$region0: #{tpu_custom_call.1}
  #allocation0 [shape = 'u32[]', space=smem, size = 0x4, offset = 0x4, fixed_abs, tag = 'smem constant byte address 0x4 - core index']
  #allocation1 [shape = 'u32[144,128]{1,0:T(1,128)}', space=vmem, size = 0x12000, scoped, tag = 'internal scratch']
  %s0 = inlined_call_operand.hbm [shape: f32[2,32], index: 0, kind: input, shape index: {}]
  %s1 = inlined_call_operand.hbm [shape: f32[8,2,32], index: 1, kind: input, shape index: {}]
  %s2 = inlined_call_operand.vmem [shape: s32[2,128], index: 2, kind: input, shape index: {}]
  %s3 = inlined_call_operand.hbm [shape: f32[32,32], index: 3, kind: input, shape index: {}]
  %s4 = inlined_call_operand.hbm [shape: f32[32,32], index: 4, kind: input, shape index: {}]
  %s5 = inlined_call_operand.vmem [shape: f32[1,32], index: 5, kind: input, shape index: {}]
  %s6 = inlined_call_operand.vmem [shape: f32[1,32], index: 6, kind: input, shape index: {}]
  %s7 = inlined_call_operand.hbm [shape: f32[2,128], index: 7, kind: output, shape index: {}]
  %s8 = sld [smem:[#allocation0]]
  $region54: #{tpu_custom_call.1} parent=0
    _
  %s10 = ssub.s32 1, %s8
  %s11 = scalar_select 0, %s10, %s8
  $region1: #{tpu_custom_call.1} parent=0
    #allocation2 [shape = 'u8[1024]{0}', space=vmem, size = 0x400, scoped, tag = 'input window, operand 0, single buffered']
    #allocation3 [shape = 's32[1]{0}', space=sflag, size = 0x4, scoped, tag = 'scoped memory for tpu_custom_call.1']
    #allocation4 [shape = 's32[1]{0}', space=sflag, size = 0x4, scoped, tag = 'scoped memory for tpu_custom_call.1']
    #allocation5 [shape = 'u8[8192]{0}', space=vmem, size = 0x2000, scoped, tag = 'input window, operand 1, single buffered']
    #allocation6 [shape = 's32[1]{0}', space=sflag, size = 0x4, scoped, tag = 'scoped memory for tpu_custom_call.1']
    #allocation7 [shape = 'u8[16384]{0}', space=vmem, size = 0x4000, scoped, tag = 'input window, operand 3, single buffered']
    #allocation8 [shape = 'u8[16384]{0}', space=vmem, size = 0x4000, scoped, tag = 'input window, operand 4, single buffered']
    #allocation9 [shape = 's32[1]{0}', space=sflag, size = 0x4, scoped, tag = 'scoped memory for tpu_custom_call.1']
    #allocation10 [shape = 'u8[1024]{0}', space=vmem, size = 0x400, scoped, tag = 'output window, operand 0, single buffered']
    %12 = vsyncpa [#allocation3], 0
    %13 = vsyncpa [#allocation6], 0
    %14 = vsyncpa [#allocation9], 0
    %15 = vsyncpa [#allocation4], 0
    // Predicated region
    $region2: #{tpu_custom_call.1} parent=1 // pred_check
      _
    $region3: #{tpu_custom_call.1} parent=1 // pred_check_branch
      %17 = sbr.rel (0) target = $region5
    $region4: #{tpu_custom_call.1} parent=1 // pred_region
      %s19 = ssub.s32 32, 32
      %20 = vsyncadd [#allocation3], %s19
      %s22 = sshll.u32 [#allocation2], 4
      %s23 = int_to_ptr.vmem [resolvable:$true] %s22
      %25 = dma.hbm_to_vmem [thread:$0]  %s0, 32, %s23, [#allocation3]
    $region5: #{tpu_custom_call.1} parent=1 // pred_fallthru
      _
    // Predicated region
    $region6: #{tpu_custom_call.1} parent=1 // pred_check
      _
    $region7: #{tpu_custom_call.1} parent=1 // pred_check_branch
      %27 = sbr.rel (0) target = $region9
    $region8: #{tpu_custom_call.1} parent=1 // pred_region
      %s29 = ssub.s32 256, 256
      %30 = vsyncadd [#allocation6], %s29
      %s31 = sshll.u32 [#allocation5], 4
      %s32 = int_to_ptr.vmem [resolvable:$true] %s31
      %37 = dma.hbm_to_vmem [thread:$0]  %s1, 256, %s32, [#allocation6], 32, 32, 2
    $region9: #{tpu_custom_call.1} parent=1 // pred_fallthru
      _
    // Predicated region
    $region10: #{tpu_custom_call.1} parent=1 // pred_check
      _
    $region11: #{tpu_custom_call.1} parent=1 // pred_check_branch
      %39 = sbr.rel (0) target = $region13
    $region12: #{tpu_custom_call.1} parent=1 // pred_region
      _
    $region13: #{tpu_custom_call.1} parent=1 // pred_fallthru
      _
    // Predicated region
    $region14: #{tpu_custom_call.1} parent=1 // pred_check
      _
    $region15: #{tpu_custom_call.1} parent=1 // pred_check_branch
      %41 = sbr.rel (0) target = $region17
    $region16: #{tpu_custom_call.1} parent=1 // pred_region
      %s43 = ssub.s32 512, 512
      %44 = vsyncadd [#allocation6], %s43
      %s45 = sshll.u32 [#allocation7], 4
      %s46 = int_to_ptr.vmem [resolvable:$true] %s45
      %51 = dma.hbm_to_vmem [thread:$0]  %s3, 512, %s46, [#allocation6], 128, 128, 8
    $region17: #{tpu_custom_call.1} parent=1 // pred_fallthru
      _
    // Predicated region
    $region18: #{tpu_custom_call.1} parent=1 // pred_check
      _
    $region19: #{tpu_custom_call.1} parent=1 // pred_check_branch
      %53 = sbr.rel (0) target = $region21
    $region20: #{tpu_custom_call.1} parent=1 // pred_region
      %s55 = ssub.s32 512, 512
      %56 = vsyncadd [#allocation9], %s55
      %s57 = sshll.u32 [#allocation8], 4
      %s58 = int_to_ptr.vmem [resolvable:$true] %s57
      %63 = dma.hbm_to_vmem [thread:$0]  %s4, 512, %s58, [#allocation9], 128, 128, 8
    $region21: #{tpu_custom_call.1} parent=1 // pred_fallthru
      _
    // Predicated region
    $region22: #{tpu_custom_call.1} parent=1 // pred_check
      _
    $region23: #{tpu_custom_call.1} parent=1 // pred_check_branch
      %65 = sbr.rel (0) target = $region25
    $region24: #{tpu_custom_call.1} parent=1 // pred_region
      _
    $region25: #{tpu_custom_call.1} parent=1 // pred_fallthru
      _
    // Predicated region
    $region26: #{tpu_custom_call.1} parent=1 // pred_check
      _
    $region27: #{tpu_custom_call.1} parent=1 // pred_check_branch
      %67 = sbr.rel (0) target = $region29
    $region28: #{tpu_custom_call.1} parent=1 // pred_region
      _
    $region29: #{tpu_custom_call.1} parent=1 // pred_fallthru
      _
    // Predicated region
    $region30: #{tpu_custom_call.1} parent=1 // pred_check
      _
    $region31: #{tpu_custom_call.1} parent=1 // pred_check_branch
      %69 = sbr.rel (0) target = $region33
    $region32: #{tpu_custom_call.1} parent=1 // pred_region
      %70 = dma.done [#allocation3], 32
    $region33: #{tpu_custom_call.1} parent=1 // pred_fallthru
      _
    // Predicated region
    $region34: #{tpu_custom_call.1} parent=1 // pred_check
      _
    $region35: #{tpu_custom_call.1} parent=1 // pred_check_branch
      %72 = sbr.rel (0) target = $region37
    $region36: #{tpu_custom_call.1} parent=1 // pred_region
      %73 = dma.done [#allocation6], 256
    $region37: #{tpu_custom_call.1} parent=1 // pred_fallthru
      _
    // Predicated region
    $region38: #{tpu_custom_call.1} parent=1 // pred_check
      _
    $region39: #{tpu_custom_call.1} parent=1 // pred_check_branch
      %75 = sbr.rel (0) target = $region41
    $region40: #{tpu_custom_call.1} parent=1 // pred_region
      %76 = dma.done [#allocation6], 512
    $region41: #{tpu_custom_call.1} parent=1 // pred_fallthru
      _
    // Predicated region
    $region42: #{tpu_custom_call.1} parent=1 // pred_check
      _
    $region43: #{tpu_custom_call.1} parent=1 // pred_check_branch
      %78 = sbr.rel (0) target = $region45
    $region44: #{tpu_custom_call.1} parent=1 // pred_region
      %79 = dma.done [#allocation9], 512
    $region45: #{tpu_custom_call.1} parent=1 // pred_fallthru
      _
    %v80 = vld [vmem:[#allocation2] sm:$0x3]
    %v81 = vld [vmem:[#allocation7] sm:$0xff]
    %v82 = vld [vmem:[#allocation7 + $0x8] sm:$0xff]
    %v83 = vld [vmem:[#allocation7 + $0x10] sm:$0xff]
    %v84 = vld [vmem:[#allocation7 + $0x18] sm:$0xff]
    %v85 = vld [vmem:[%s5] sm:$0x1]
    %v87 = vlaneseq
    %v88 = vshrl.u32 %v87, 7
    %v89 = vsub.s32 0, %v88
    %v90 = vrot.slane %v85, %v89
    %vm92 = vcmask 261120
    %v94 = vsel %vm92, %v80, 0
    %96 = vmatprep.subr.mxu0 0.0
    %97 = vmatpush1.msra.mxu0 %v81
    %98 = vmatprep.subr.mxu0 0.0
    %99 = vmatpush1.msra.mxu0 %v82
    %100 = vmatprep.subr.mxu0 0.0
    %101 = vmatpush1.msra.mxu0 %v83
    %102 = vmatprep.subr.mxu0 0.0
    %103 = vmatpush1.msra.mxu0 %v84
    %104 = vmatprep.subr.mxu0 0.0
    %105 = vmatpush1.msra.mxu0 0.0
    %106 = vmatprep.subr.mxu0 0.0
    %107 = vmatpush1.msra.mxu0 0.0
    %108 = vmatprep.subr.mxu0 0.0
    %109 = vmatpush1.msra.mxu0 0.0
    %110 = vmatprep.subr.mxu0 0.0
    %111 = vmatpush1.msra.mxu0 0.0
    %112 = vmatprep.subr.mxu0 0.0
    %113 = vmatpush1.msra.mxu0 0.0
    %114 = vmatprep.subr.mxu0 0.0
    %115 = vmatpush1.msra.mxu0 0.0
    %116 = vmatprep.subr.mxu0 0.0
    %117 = vmatpush1.msra.mxu0 0.0
    %118 = vmatprep.subr.mxu0 0.0
    %119 = vmatpush1.msra.mxu0 0.0
    %120 = vmatprep.subr.mxu0 0.0
    %121 = vmatpush1.msra.mxu0 0.0
    %122 = vmatprep.subr.mxu0 0.0
    %123 = vmatpush1.msra.mxu0 0.0
    %124 = vmatprep.subr.mxu0 0.0
    %125 = vmatpush1.msra.mxu0 0.0
    %126 = vmatprep.subr.mxu0 0.0
    %127 = vmatpush1.msra.mxu0 0.0
    %128 = vmatprep.subr.mxu0 0.0
    %129 = vmatpush1.msra.mxu0 0.0
    %130 = vmatprep.subr.mxu0 0.0
    %131 = vmatpush1.msra.mxu0 0.0
    %132 = vmatprep.subr.mxu0 0.0
    %133 = vmatpush1.msra.mxu0 0.0
    %134 = vmatprep.subr.mxu0 0.0
    %135 = vmatpush1.msra.mxu0 0.0
    %136 = vmatprep.subr.mxu0 0.0
    %137 = vmatpush1.msra.mxu0 0.0
    %138 = vmatprep.subr.mxu0 0.0
    %139 = vmatpush1.msra.mxu0 0.0
    %140 = vmatprep.subr.mxu0 0.0
    %141 = vmatpush1.msra.mxu0 0.0
    %142 = vmatprep.subr.mxu0 0.0
    %143 = vmatpush1.msra.mxu0 0.0
    %144 = vmatprep.subr.mxu0 0.0
    %145 = vmatpush1.msra.mxu0 0.0
    %146 = vmatprep.subr.mxu0 0.0
    %147 = vmatpush1.msra.mxu0 0.0
    %148 = vmatprep.subr.mxu0 0.0
    %149 = vmatpush1.msra.mxu0 0.0
    %150 = vmatprep.subr.mxu0 0.0
    %151 = vmatpush1.msra.mxu0 0.0
    %152 = vmatprep.subr.mxu0 0.0
    %153 = vmatpush1.msra.mxu0 0.0
    %154 = vmatprep.subr.mxu0 0.0
    %155 = vmatpush1.msra.mxu0 0.0
    %156 = vmatprep.subr.mxu0 0.0
    %157 = vmatpush1.msra.mxu0 0.0
    %158 = vmatprep.subr.mxu0 0.0
    %159 = vmatpush1.msra.mxu0 0.0
    %160 = vmatprep.mubr.f32.mxu0 0.0
    %161 = vmatmul.mubr.f32.gmra.mrb[0].mxu0 %v94
    %v162 = vpop.f32.mrb[0].mxu0
    %v163 = vadd.f32 %v90, %v162
    %v164 = vpop.f32.mrb[0].mxu0
    %165 = vdwg.mxu0
    %v166 = vld [vmem:[#allocation8] sm:$0xff]
    %v167 = vld [vmem:[#allocation8 + $0x8] sm:$0xff]
    %v168 = vld [vmem:[#allocation8 + $0x10] sm:$0xff]
    %v169 = vld [vmem:[#allocation8 + $0x18] sm:$0xff]
    %v170 = vld [vmem:[%s6] sm:$0x1]
    %v171 = vld [vmem:[#allocation5] sm:$0x3]
    %v173 = vsel %vm92, %v171, 0
    %175 = vmatprep.subr.mxu0 0.0
    %176 = vmatpush1.msra.mxu0 %v166
    %177 = vmatprep.subr.mxu0 0.0
    %178 = vmatpush1.msra.mxu0 %v167
    %179 = vmatprep.subr.mxu0 0.0
    %180 = vmatpush1.msra.mxu0 %v168
    %181 = vmatprep.subr.mxu0 0.0
    %182 = vmatpush1.msra.mxu0 %v169
    %183 = vmatprep.subr.mxu0 0.0
    %184 = vmatpush1.msra.mxu0 0.0
    %185 = vmatprep.subr.mxu0 0.0
    %186 = vmatpush1.msra.mxu0 0.0
    %187 = vmatprep.subr.mxu0 0.0
    %188 = vmatpush1.msra.mxu0 0.0
    %189 = vmatprep.subr.mxu0 0.0
    %190 = vmatpush1.msra.mxu0 0.0
    %191 = vmatprep.subr.mxu0 0.0
    %192 = vmatpush1.msra.mxu0 0.0
    %193 = vmatprep.subr.mxu0 0.0
    %194 = vmatpush1.msra.mxu0 0.0
    %195 = vmatprep.subr.mxu0 0.0
    %196 = vmatpush1.msra.mxu0 0.0
    %197 = vmatprep.subr.mxu0 0.0
    %198 = vmatpush1.msra.mxu0 0.0
    %199 = vmatprep.subr.mxu0 0.0
    %200 = vmatpush1.msra.mxu0 0.0
    %201 = vmatprep.subr.mxu0 0.0
    %202 = vmatpush1.msra.mxu0 0.0
    %203 = vmatprep.subr.mxu0 0.0
    %204 = vmatpush1.msra.mxu0 0.0
    %205 = vmatprep.subr.mxu0 0.0
    %206 = vmatpush1.msra.mxu0 0.0
    %207 = vmatprep.subr.mxu0 0.0
    %208 = vmatpush1.msra.mxu0 0.0
    %209 = vmatprep.subr.mxu0 0.0
    %210 = vmatpush1.msra.mxu0 0.0
    %211 = vmatprep.subr.mxu0 0.0
    %212 = vmatpush1.msra.mxu0 0.0
    %213 = vmatprep.subr.mxu0 0.0
    %214 = vmatpush1.msra.mxu0 0.0
    %215 = vmatprep.subr.mxu0 0.0
    %216 = vmatpush1.msra.mxu0 0.0
    %217 = vmatprep.subr.mxu0 0.0
    %218 = vmatpush1.msra.mxu0 0.0
    %219 = vmatprep.subr.mxu0 0.0
    %220 = vmatpush1.msra.mxu0 0.0
    %221 = vmatprep.subr.mxu0 0.0
    %222 = vmatpush1.msra.mxu0 0.0
    %223 = vmatprep.subr.mxu0 0.0
    %224 = vmatpush1.msra.mxu0 0.0
    %225 = vmatprep.subr.mxu0 0.0
    %226 = vmatpush1.msra.mxu0 0.0
    %227 = vmatprep.subr.mxu0 0.0
    %228 = vmatpush1.msra.mxu0 0.0
    %229 = vmatprep.subr.mxu0 0.0
    %230 = vmatpush1.msra.mxu0 0.0
    %231 = vmatprep.subr.mxu0 0.0
    %232 = vmatpush1.msra.mxu0 0.0
    %233 = vmatprep.subr.mxu0 0.0
    %234 = vmatpush1.msra.mxu0 0.0
    %235 = vmatprep.subr.mxu0 0.0
    %236 = vmatpush1.msra.mxu0 0.0
    %237 = vmatprep.subr.mxu0 0.0
    %238 = vmatpush1.msra.mxu0 0.0
    %239 = vmatprep.mubr.f32.mxu0 0.0
    %240 = vmatmul.mubr.f32.gmra.mrb[0].mxu0 %v173
    %v241 = vpop.f32.mrb[0].mxu0
    %v242 = vadd.f32 %v163, %v241
    %v243 = vpop.f32.mrb[0].mxu0
    %244 = vdwg.mxu0
    %v245 = vtanh.pop %v242
    %v247 = vlaneseq
    %v248 = vshrl.u32 %v247, 7
    %v249 = vsub.s32 0, %v248
    %v250 = vrot.slane %v170, %v249
    %v252 = vmul.f32 %v245, %v250
    %vm253 = vcmask 254976
    %v254 = vsel %vm253, %v252, 0.0
    %255 = vadd.xlane.f32.xlu0 %v254
    %v256 = vpop.xlane.xlu0 %255
    %s257 = scalar_lea.vmem [#allocation5], 2
    %v258 = vld [vmem:[%s257] sm:$0x3]
    %v260 = vsel %vm92, %v258, 0
    %262 = vmatprep.subr.mxu0 0.0
    %263 = vmatpush1.msra.mxu0 %v166
    %264 = vmatprep.subr.mxu0 0.0
    %265 = vmatpush1.msra.mxu0 %v167
    %266 = vmatprep.subr.mxu0 0.0
    %267 = vmatpush1.msra.mxu0 %v168
    %268 = vmatprep.subr.mxu0 0.0
    %269 = vmatpush1.msra.mxu0 %v169
    %270 = vmatprep.subr.mxu0 0.0
    %271 = vmatpush1.msra.mxu0 0.0
    %272 = vmatprep.subr.mxu0 0.0
    %273 = vmatpush1.msra.mxu0 0.0
    %274 = vmatprep.subr.mxu0 0.0
    %275 = vmatpush1.msra.mxu0 0.0
    %276 = vmatprep.subr.mxu0 0.0
    %277 = vmatpush1.msra.mxu0 0.0
    %278 = vmatprep.subr.mxu0 0.0
    %279 = vmatpush1.msra.mxu0 0.0
    %280 = vmatprep.subr.mxu0 0.0
    %281 = vmatpush1.msra.mxu0 0.0
    %282 = vmatprep.subr.mxu0 0.0
    %283 = vmatpush1.msra.mxu0 0.0
    %284 = vmatprep.subr.mxu0 0.0
    %285 = vmatpush1.msra.mxu0 0.0
    %286 = vmatprep.subr.mxu0 0.0
    %287 = vmatpush1.msra.mxu0 0.0
    %288 = vmatprep.subr.mxu0 0.0
    %289 = vmatpush1.msra.mxu0 0.0
    %290 = vmatprep.subr.mxu0 0.0
    %291 = vmatpush1.msra.mxu0 0.0
    %292 = vmatprep.subr.mxu0 0.0
    %293 = vmatpush1.msra.mxu0 0.0
    %294 = vmatprep.subr.mxu0 0.0
    %295 = vmatpush1.msra.mxu0 0.0
    %296 = vmatprep.subr.mxu0 0.0
    %297 = vmatpush1.msra.mxu0 0.0
    %298 = vmatprep.subr.mxu0 0.0
    %299 = vmatpush1.msra.mxu0 0.0
    %300 = vmatprep.subr.mxu0 0.0
    %301 = vmatpush1.msra.mxu0 0.0
    %302 = vmatprep.subr.mxu0 0.0
    %303 = vmatpush1.msra.mxu0 0.0
    %304 = vmatprep.subr.mxu0 0.0
    %305 = vmatpush1.msra.mxu0 0.0
    %306 = vmatprep.subr.mxu0 0.0
    %307 = vmatpush1.msra.mxu0 0.0
    %308 = vmatprep.subr.mxu0 0.0
    %309 = vmatpush1.msra.mxu0 0.0
    %310 = vmatprep.subr.mxu0 0.0
    %311 = vmatpush1.msra.mxu0 0.0
    %312 = vmatprep.subr.mxu0 0.0
    %313 = vmatpush1.msra.mxu0 0.0
    %314 = vmatprep.subr.mxu0 0.0
    %315 = vmatpush1.msra.mxu0 0.0
    %316 = vmatprep.subr.mxu0 0.0
    %317 = vmatpush1.msra.mxu0 0.0
    %318 = vmatprep.subr.mxu0 0.0
    %319 = vmatpush1.msra.mxu0 0.0
    %320 = vmatprep.subr.mxu0 0.0
    %321 = vmatpush1.msra.mxu0 0.0
    %322 = vmatprep.subr.mxu0 0.0
    %323 = vmatpush1.msra.mxu0 0.0
    %324 = vmatprep.subr.mxu0 0.0
    %325 = vmatpush1.msra.mxu0 0.0
    %326 = vmatprep.mubr.f32.mxu0 0.0
    %327 = vmatmul.mubr.f32.gmra.mrb[0].mxu0 %v260
    %v328 = vpop.f32.mrb[0].mxu0
    %v329 = vadd.f32 %v163, %v328
    %v330 = vpop.f32.mrb[0].mxu0
    %331 = vdwg.mxu0
    %v332 = vtanh.pop %v329
    %v333 = vmul.f32 %v332, %v250
    %v334 = vsel %vm253, %v333, 0.0
    %335 = vadd.xlane.f32.xlu0 %v334
    %v336 = vpop.xlane.xlu0 %335
    %s337 = scalar_lea.vmem [#allocation5], 4
    %v338 = vld [vmem:[%s337] sm:$0x3]
    %v340 = vsel %vm92, %v338, 0
    %342 = vmatprep.subr.mxu0 0.0
    %343 = vmatpush1.msra.mxu0 %v166
    %344 = vmatprep.subr.mxu0 0.0
    %345 = vmatpush1.msra.mxu0 %v167
    %346 = vmatprep.subr.mxu0 0.0
    %347 = vmatpush1.msra.mxu0 %v168
    %348 = vmatprep.subr.mxu0 0.0
    %349 = vmatpush1.msra.mxu0 %v169
    %350 = vmatprep.subr.mxu0 0.0
    %351 = vmatpush1.msra.mxu0 0.0
    %352 = vmatprep.subr.mxu0 0.0
    %353 = vmatpush1.msra.mxu0 0.0
    %354 = vmatprep.subr.mxu0 0.0
    %355 = vmatpush1.msra.mxu0 0.0
    %356 = vmatprep.subr.mxu0 0.0
    %357 = vmatpush1.msra.mxu0 0.0
    %358 = vmatprep.subr.mxu0 0.0
    %359 = vmatpush1.msra.mxu0 0.0
    %360 = vmatprep.subr.mxu0 0.0
    %361 = vmatpush1.msra.mxu0 0.0
    %362 = vmatprep.subr.mxu0 0.0
    %363 = vmatpush1.msra.mxu0 0.0
    %364 = vmatprep.subr.mxu0 0.0
    %365 = vmatpush1.msra.mxu0 0.0
    %366 = vmatprep.subr.mxu0 0.0
    %367 = vmatpush1.msra.mxu0 0.0
    %368 = vmatprep.subr.mxu0 0.0
    %369 = vmatpush1.msra.mxu0 0.0
    %370 = vmatprep.subr.mxu0 0.0
    %371 = vmatpush1.msra.mxu0 0.0
    %372 = vmatprep.subr.mxu0 0.0
    %373 = vmatpush1.msra.mxu0 0.0
    %374 = vmatprep.subr.mxu0 0.0
    %375 = vmatpush1.msra.mxu0 0.0
    %376 = vmatprep.subr.mxu0 0.0
    %377 = vmatpush1.msra.mxu0 0.0
    %378 = vmatprep.subr.mxu0 0.0
    %379 = vmatpush1.msra.mxu0 0.0
    %380 = vmatprep.subr.mxu0 0.0
    %381 = vmatpush1.msra.mxu0 0.0
    %382 = vmatprep.subr.mxu0 0.0
    %383 = vmatpush1.msra.mxu0 0.0
    %384 = vmatprep.subr.mxu0 0.0
    %385 = vmatpush1.msra.mxu0 0.0
    %386 = vmatprep.subr.mxu0 0.0
    %387 = vmatpush1.msra.mxu0 0.0
    %388 = vmatprep.subr.mxu0 0.0
    %389 = vmatpush1.msra.mxu0 0.0
    %390 = vmatprep.subr.mxu0 0.0
    %391 = vmatpush1.msra.mxu0 0.0
    %392 = vmatprep.subr.mxu0 0.0
    %393 = vmatpush1.msra.mxu0 0.0
    %394 = vmatprep.subr.mxu0 0.0
    %395 = vmatpush1.msra.mxu0 0.0
    %396 = vmatprep.subr.mxu0 0.0
    %397 = vmatpush1.msra.mxu0 0.0
    %398 = vmatprep.subr.mxu0 0.0
    %399 = vmatpush1.msra.mxu0 0.0
    %400 = vmatprep.subr.mxu0 0.0
    %401 = vmatpush1.msra.mxu0 0.0
    %402 = vmatprep.subr.mxu0 0.0
    %403 = vmatpush1.msra.mxu0 0.0
    %404 = vmatprep.subr.mxu0 0.0
    %405 = vmatpush1.msra.mxu0 0.0
    %406 = vmatprep.mubr.f32.mxu0 0.0
    %407 = vmatmul.mubr.f32.gmra.mrb[0].mxu0 %v340
    %v408 = vpop.f32.mrb[0].mxu0
    %v409 = vadd.f32 %v163, %v408
    %v410 = vpop.f32.mrb[0].mxu0
    %411 = vdwg.mxu0
    %v412 = vtanh.pop %v409
    %v413 = vmul.f32 %v412, %v250
    %v414 = vsel %vm253, %v413, 0.0
    %415 = vadd.xlane.f32.xlu0 %v414
    %v416 = vpop.xlane.xlu0 %415
    %s417 = scalar_lea.vmem [#allocation5], 6
    %v418 = vld [vmem:[%s417] sm:$0x3]
    %v420 = vsel %vm92, %v418, 0
    %422 = vmatprep.subr.mxu0 0.0
    %423 = vmatpush1.msra.mxu0 %v166
    %424 = vmatprep.subr.mxu0 0.0
    %425 = vmatpush1.msra.mxu0 %v167
    %426 = vmatprep.subr.mxu0 0.0
    %427 = vmatpush1.msra.mxu0 %v168
    %428 = vmatprep.subr.mxu0 0.0
    %429 = vmatpush1.msra.mxu0 %v169
    %430 = vmatprep.subr.mxu0 0.0
    %431 = vmatpush1.msra.mxu0 0.0
    %432 = vmatprep.subr.mxu0 0.0
    %433 = vmatpush1.msra.mxu0 0.0
    %434 = vmatprep.subr.mxu0 0.0
    %435 = vmatpush1.msra.mxu0 0.0
    %436 = vmatprep.subr.mxu0 0.0
    %437 = vmatpush1.msra.mxu0 0.0
    %438 = vmatprep.subr.mxu0 0.0
    %439 = vmatpush1.msra.mxu0 0.0
    %440 = vmatprep.subr.mxu0 0.0
    %441 = vmatpush1.msra.mxu0 0.0
    %442 = vmatprep.subr.mxu0 0.0
    %443 = vmatpush1.msra.mxu0 0.0
    %444 = vmatprep.subr.mxu0 0.0
    %445 = vmatpush1.msra.mxu0 0.0
    %446 = vmatprep.subr.mxu0 0.0
    %447 = vmatpush1.msra.mxu0 0.0
    %448 = vmatprep.subr.mxu0 0.0
    %449 = vmatpush1.msra.mxu0 0.0
    %450 = vmatprep.subr.mxu0 0.0
    %451 = vmatpush1.msra.mxu0 0.0
    %452 = vmatprep.subr.mxu0 0.0
    %453 = vmatpush1.msra.mxu0 0.0
    %454 = vmatprep.subr.mxu0 0.0
    %455 = vmatpush1.msra.mxu0 0.0
    %456 = vmatprep.subr.mxu0 0.0
    %457 = vmatpush1.msra.mxu0 0.0
    %458 = vmatprep.subr.mxu0 0.0
    %459 = vmatpush1.msra.mxu0 0.0
    %460 = vmatprep.subr.mxu0 0.0
    %461 = vmatpush1.msra.mxu0 0.0
    %462 = vmatprep.subr.mxu0 0.0
    %463 = vmatpush1.msra.mxu0 0.0
    %464 = vmatprep.subr.mxu0 0.0
    %465 = vmatpush1.msra.mxu0 0.0
    %466 = vmatprep.subr.mxu0 0.0
    %467 = vmatpush1.msra.mxu0 0.0
    %468 = vmatprep.subr.mxu0 0.0
    %469 = vmatpush1.msra.mxu0 0.0
    %470 = vmatprep.subr.mxu0 0.0
    %471 = vmatpush1.msra.mxu0 0.0
    %472 = vmatprep.subr.mxu0 0.0
    %473 = vmatpush1.msra.mxu0 0.0
    %474 = vmatprep.subr.mxu0 0.0
    %475 = vmatpush1.msra.mxu0 0.0
    %476 = vmatprep.subr.mxu0 0.0
    %477 = vmatpush1.msra.mxu0 0.0
    %478 = vmatprep.subr.mxu0 0.0
    %479 = vmatpush1.msra.mxu0 0.0
    %480 = vmatprep.subr.mxu0 0.0
    %481 = vmatpush1.msra.mxu0 0.0
    %482 = vmatprep.subr.mxu0 0.0
    %483 = vmatpush1.msra.mxu0 0.0
    %484 = vmatprep.subr.mxu0 0.0
    %485 = vmatpush1.msra.mxu0 0.0
    %486 = vmatprep.mubr.f32.mxu0 0.0
    %487 = vmatmul.mubr.f32.gmra.mrb[0].mxu0 %v420
    %v488 = vpop.f32.mrb[0].mxu0
    %v489 = vadd.f32 %v163, %v488
    %v490 = vpop.f32.mrb[0].mxu0
    %491 = vdwg.mxu0
    %v492 = vtanh.pop %v489
    %v493 = vmul.f32 %v492, %v250
    %v494 = vsel %vm253, %v493, 0.0
    %495 = vadd.xlane.f32.xlu0 %v494
    %v496 = vpop.xlane.xlu0 %495
    %s497 = scalar_lea.vmem [#allocation5], 8
    %v498 = vld [vmem:[%s497] sm:$0x3]
    %v500 = vsel %vm92, %v498, 0
    %502 = vmatprep.subr.mxu0 0.0
    %503 = vmatpush1.msra.mxu0 %v166
    %504 = vmatprep.subr.mxu0 0.0
    %505 = vmatpush1.msra.mxu0 %v167
    %506 = vmatprep.subr.mxu0 0.0
    %507 = vmatpush1.msra.mxu0 %v168
    %508 = vmatprep.subr.mxu0 0.0
    %509 = vmatpush1.msra.mxu0 %v169
    %510 = vmatprep.subr.mxu0 0.0
    %511 = vmatpush1.msra.mxu0 0.0
    %512 = vmatprep.subr.mxu0 0.0
    %513 = vmatpush1.msra.mxu0 0.0
    %514 = vmatprep.subr.mxu0 0.0
    %515 = vmatpush1.msra.mxu0 0.0
    %516 = vmatprep.subr.mxu0 0.0
    %517 = vmatpush1.msra.mxu0 0.0
    %518 = vmatprep.subr.mxu0 0.0
    %519 = vmatpush1.msra.mxu0 0.0
    %520 = vmatprep.subr.mxu0 0.0
    %521 = vmatpush1.msra.mxu0 0.0
    %522 = vmatprep.subr.mxu0 0.0
    %523 = vmatpush1.msra.mxu0 0.0
    %524 = vmatprep.subr.mxu0 0.0
    %525 = vmatpush1.msra.mxu0 0.0
    %526 = vmatprep.subr.mxu0 0.0
    %527 = vmatpush1.msra.mxu0 0.0
    %528 = vmatprep.subr.mxu0 0.0
    %529 = vmatpush1.msra.mxu0 0.0
    %530 = vmatprep.subr.mxu0 0.0
    %531 = vmatpush1.msra.mxu0 0.0
    %532 = vmatprep.subr.mxu0 0.0
    %533 = vmatpush1.msra.mxu0 0.0
    %534 = vmatprep.subr.mxu0 0.0
    %535 = vmatpush1.msra.mxu0 0.0
    %536 = vmatprep.subr.mxu0 0.0
    %537 = vmatpush1.msra.mxu0 0.0
    %538 = vmatprep.subr.mxu0 0.0
    %539 = vmatpush1.msra.mxu0 0.0
    %540 = vmatprep.subr.mxu0 0.0
    %541 = vmatpush1.msra.mxu0 0.0
    %542 = vmatprep.subr.mxu0 0.0
    %543 = vmatpush1.msra.mxu0 0.0
    %544 = vmatprep.subr.mxu0 0.0
    %545 = vmatpush1.msra.mxu0 0.0
    %546 = vmatprep.subr.mxu0 0.0
    %547 = vmatpush1.msra.mxu0 0.0
    %548 = vmatprep.subr.mxu0 0.0
    %549 = vmatpush1.msra.mxu0 0.0
    %550 = vmatprep.subr.mxu0 0.0
    %551 = vmatpush1.msra.mxu0 0.0
    %552 = vmatprep.subr.mxu0 0.0
    %553 = vmatpush1.msra.mxu0 0.0
    %554 = vmatprep.subr.mxu0 0.0
    %555 = vmatpush1.msra.mxu0 0.0
    %556 = vmatprep.subr.mxu0 0.0
    %557 = vmatpush1.msra.mxu0 0.0
    %558 = vmatprep.subr.mxu0 0.0
    %559 = vmatpush1.msra.mxu0 0.0
    %560 = vmatprep.subr.mxu0 0.0
    %561 = vmatpush1.msra.mxu0 0.0
    %562 = vmatprep.subr.mxu0 0.0
    %563 = vmatpush1.msra.mxu0 0.0
    %564 = vmatprep.subr.mxu0 0.0
    %565 = vmatpush1.msra.mxu0 0.0
    %566 = vmatprep.mubr.f32.mxu0 0.0
    %567 = vmatmul.mubr.f32.gmra.mrb[0].mxu0 %v500
    %v568 = vpop.f32.mrb[0].mxu0
    %v569 = vadd.f32 %v163, %v568
    %v570 = vpop.f32.mrb[0].mxu0
    %571 = vdwg.mxu0
    %v572 = vtanh.pop %v569
    %v573 = vmul.f32 %v572, %v250
    %v574 = vsel %vm253, %v573, 0.0
    %575 = vadd.xlane.f32.xlu0 %v574
    %v576 = vpop.xlane.xlu0 %575
    %s577 = scalar_lea.vmem [#allocation5], 10
    %v578 = vld [vmem:[%s577] sm:$0x3]
    %v580 = vsel %vm92, %v578, 0
    %582 = vmatprep.subr.mxu0 0.0
    %583 = vmatpush1.msra.mxu0 %v166
    %584 = vmatprep.subr.mxu0 0.0
    %585 = vmatpush1.msra.mxu0 %v167
    %586 = vmatprep.subr.mxu0 0.0
    %587 = vmatpush1.msra.mxu0 %v168
    %588 = vmatprep.subr.mxu0 0.0
    %589 = vmatpush1.msra.mxu0 %v169
    %590 = vmatprep.subr.mxu0 0.0
    %591 = vmatpush1.msra.mxu0 0.0
    %592 = vmatprep.subr.mxu0 0.0
    %593 = vmatpush1.msra.mxu0 0.0
    %594 = vmatprep.subr.mxu0 0.0
    %595 = vmatpush1.msra.mxu0 0.0
    %596 = vmatprep.subr.mxu0 0.0
    %597 = vmatpush1.msra.mxu0 0.0
    %598 = vmatprep.subr.mxu0 0.0
    %599 = vmatpush1.msra.mxu0 0.0
    %600 = vmatprep.subr.mxu0 0.0
    %601 = vmatpush1.msra.mxu0 0.0
    %602 = vmatprep.subr.mxu0 0.0
    %603 = vmatpush1.msra.mxu0 0.0
    %604 = vmatprep.subr.mxu0 0.0
    %605 = vmatpush1.msra.mxu0 0.0
    %606 = vmatprep.subr.mxu0 0.0
    %607 = vmatpush1.msra.mxu0 0.0
    %608 = vmatprep.subr.mxu0 0.0
    %609 = vmatpush1.msra.mxu0 0.0
    %610 = vmatprep.subr.mxu0 0.0
    %611 = vmatpush1.msra.mxu0 0.0
    %612 = vmatprep.subr.mxu0 0.0
    %613 = vmatpush1.msra.mxu0 0.0
    %614 = vmatprep.subr.mxu0 0.0
    %615 = vmatpush1.msra.mxu0 0.0
    %616 = vmatprep.subr.mxu0 0.0
    %617 = vmatpush1.msra.mxu0 0.0
    %618 = vmatprep.subr.mxu0 0.0
    %619 = vmatpush1.msra.mxu0 0.0
    %620 = vmatprep.subr.mxu0 0.0
    %621 = vmatpush1.msra.mxu0 0.0
    %622 = vmatprep.subr.mxu0 0.0
    %623 = vmatpush1.msra.mxu0 0.0
    %624 = vmatprep.subr.mxu0 0.0
    %625 = vmatpush1.msra.mxu0 0.0
    %626 = vmatprep.subr.mxu0 0.0
    %627 = vmatpush1.msra.mxu0 0.0
    %628 = vmatprep.subr.mxu0 0.0
    %629 = vmatpush1.msra.mxu0 0.0
    %630 = vmatprep.subr.mxu0 0.0
    %631 = vmatpush1.msra.mxu0 0.0
    %632 = vmatprep.subr.mxu0 0.0
    %633 = vmatpush1.msra.mxu0 0.0
    %634 = vmatprep.subr.mxu0 0.0
    %635 = vmatpush1.msra.mxu0 0.0
    %636 = vmatprep.subr.mxu0 0.0
    %637 = vmatpush1.msra.mxu0 0.0
    %638 = vmatprep.subr.mxu0 0.0
    %639 = vmatpush1.msra.mxu0 0.0
    %640 = vmatprep.subr.mxu0 0.0
    %641 = vmatpush1.msra.mxu0 0.0
    %642 = vmatprep.subr.mxu0 0.0
    %643 = vmatpush1.msra.mxu0 0.0
    %644 = vmatprep.subr.mxu0 0.0
    %645 = vmatpush1.msra.mxu0 0.0
    %646 = vmatprep.mubr.f32.mxu0 0.0
    %647 = vmatmul.mubr.f32.gmra.mrb[0].mxu0 %v580
    %v648 = vpop.f32.mrb[0].mxu0
    %v649 = vadd.f32 %v163, %v648
    %v650 = vpop.f32.mrb[0].mxu0
    %651 = vdwg.mxu0
    %v652 = vtanh.pop %v649
    %v653 = vmul.f32 %v652, %v250
    %v654 = vsel %vm253, %v653, 0.0
    %655 = vadd.xlane.f32.xlu0 %v654
    %v656 = vpop.xlane.xlu0 %655
    %s657 = scalar_lea.vmem [#allocation5], 12
    %v658 = vld [vmem:[%s657] sm:$0x3]
    %v660 = vsel %vm92, %v658, 0
    %662 = vmatprep.subr.mxu0 0.0
    %663 = vmatpush1.msra.mxu0 %v166
    %664 = vmatprep.subr.mxu0 0.0
    %665 = vmatpush1.msra.mxu0 %v167
    %666 = vmatprep.subr.mxu0 0.0
    %667 = vmatpush1.msra.mxu0 %v168
    %668 = vmatprep.subr.mxu0 0.0
    %669 = vmatpush1.msra.mxu0 %v169
    %670 = vmatprep.subr.mxu0 0.0
    %671 = vmatpush1.msra.mxu0 0.0
    %672 = vmatprep.subr.mxu0 0.0
    %673 = vmatpush1.msra.mxu0 0.0
    %674 = vmatprep.subr.mxu0 0.0
    %675 = vmatpush1.msra.mxu0 0.0
    %676 = vmatprep.subr.mxu0 0.0
    %677 = vmatpush1.msra.mxu0 0.0
    %678 = vmatprep.subr.mxu0 0.0
    %679 = vmatpush1.msra.mxu0 0.0
    %680 = vmatprep.subr.mxu0 0.0
    %681 = vmatpush1.msra.mxu0 0.0
    %682 = vmatprep.subr.mxu0 0.0
    %683 = vmatpush1.msra.mxu0 0.0
    %684 = vmatprep.subr.mxu0 0.0
    %685 = vmatpush1.msra.mxu0 0.0
    %686 = vmatprep.subr.mxu0 0.0
    %687 = vmatpush1.msra.mxu0 0.0
    %688 = vmatprep.subr.mxu0 0.0
    %689 = vmatpush1.msra.mxu0 0.0
    %690 = vmatprep.subr.mxu0 0.0
    %691 = vmatpush1.msra.mxu0 0.0
    %692 = vmatprep.subr.mxu0 0.0
    %693 = vmatpush1.msra.mxu0 0.0
    %694 = vmatprep.subr.mxu0 0.0
    %695 = vmatpush1.msra.mxu0 0.0
    %696 = vmatprep.subr.mxu0 0.0
    %697 = vmatpush1.msra.mxu0 0.0
    %698 = vmatprep.subr.mxu0 0.0
    %699 = vmatpush1.msra.mxu0 0.0
    %700 = vmatprep.subr.mxu0 0.0
    %701 = vmatpush1.msra.mxu0 0.0
    %702 = vmatprep.subr.mxu0 0.0
    %703 = vmatpush1.msra.mxu0 0.0
    %704 = vmatprep.subr.mxu0 0.0
    %705 = vmatpush1.msra.mxu0 0.0
    %706 = vmatprep.subr.mxu0 0.0
    %707 = vmatpush1.msra.mxu0 0.0
    %708 = vmatprep.subr.mxu0 0.0
    %709 = vmatpush1.msra.mxu0 0.0
    %710 = vmatprep.subr.mxu0 0.0
    %711 = vmatpush1.msra.mxu0 0.0
    %712 = vmatprep.subr.mxu0 0.0
    %713 = vmatpush1.msra.mxu0 0.0
    %714 = vmatprep.subr.mxu0 0.0
    %715 = vmatpush1.msra.mxu0 0.0
    %716 = vmatprep.subr.mxu0 0.0
    %717 = vmatpush1.msra.mxu0 0.0
    %718 = vmatprep.subr.mxu0 0.0
    %719 = vmatpush1.msra.mxu0 0.0
    %720 = vmatprep.subr.mxu0 0.0
    %721 = vmatpush1.msra.mxu0 0.0
    %722 = vmatprep.subr.mxu0 0.0
    %723 = vmatpush1.msra.mxu0 0.0
    %724 = vmatprep.subr.mxu0 0.0
    %725 = vmatpush1.msra.mxu0 0.0
    %726 = vmatprep.mubr.f32.mxu0 0.0
    %727 = vmatmul.mubr.f32.gmra.mrb[0].mxu0 %v660
    %v728 = vpop.f32.mrb[0].mxu0
    %v729 = vadd.f32 %v163, %v728
    %v730 = vpop.f32.mrb[0].mxu0
    %731 = vdwg.mxu0
    %v732 = vtanh.pop %v729
    %v733 = vmul.f32 %v732, %v250
    %v734 = vsel %vm253, %v733, 0.0
    %735 = vadd.xlane.f32.xlu0 %v734
    %v736 = vpop.xlane.xlu0 %735
    %s737 = scalar_lea.vmem [#allocation5], 14
    %v738 = vld [vmem:[%s737] sm:$0x3]
    %v740 = vsel %vm92, %v738, 0
    %742 = vmatprep.subr.mxu0 0.0
    %743 = vmatpush1.msra.mxu0 %v166
    %744 = vmatprep.subr.mxu0 0.0
    %745 = vmatpush1.msra.mxu0 %v167
    %746 = vmatprep.subr.mxu0 0.0
    %747 = vmatpush1.msra.mxu0 %v168
    %748 = vmatprep.subr.mxu0 0.0
    %749 = vmatpush1.msra.mxu0 %v169
    %750 = vmatprep.subr.mxu0 0.0
    %751 = vmatpush1.msra.mxu0 0.0
    %752 = vmatprep.subr.mxu0 0.0
    %753 = vmatpush1.msra.mxu0 0.0
    %754 = vmatprep.subr.mxu0 0.0
    %755 = vmatpush1.msra.mxu0 0.0
    %756 = vmatprep.subr.mxu0 0.0
    %757 = vmatpush1.msra.mxu0 0.0
    %758 = vmatprep.subr.mxu0 0.0
    %759 = vmatpush1.msra.mxu0 0.0
    %760 = vmatprep.subr.mxu0 0.0
    %761 = vmatpush1.msra.mxu0 0.0
    %762 = vmatprep.subr.mxu0 0.0
    %763 = vmatpush1.msra.mxu0 0.0
    %764 = vmatprep.subr.mxu0 0.0
    %765 = vmatpush1.msra.mxu0 0.0
    %766 = vmatprep.subr.mxu0 0.0
    %767 = vmatpush1.msra.mxu0 0.0
    %768 = vmatprep.subr.mxu0 0.0
    %769 = vmatpush1.msra.mxu0 0.0
    %770 = vmatprep.subr.mxu0 0.0
    %771 = vmatpush1.msra.mxu0 0.0
    %772 = vmatprep.subr.mxu0 0.0
    %773 = vmatpush1.msra.mxu0 0.0
    %774 = vmatprep.subr.mxu0 0.0
    %775 = vmatpush1.msra.mxu0 0.0
    %776 = vmatprep.subr.mxu0 0.0
    %777 = vmatpush1.msra.mxu0 0.0
    %778 = vmatprep.subr.mxu0 0.0
    %779 = vmatpush1.msra.mxu0 0.0
    %780 = vmatprep.subr.mxu0 0.0
    %781 = vmatpush1.msra.mxu0 0.0
    %782 = vmatprep.subr.mxu0 0.0
    %783 = vmatpush1.msra.mxu0 0.0
    %784 = vmatprep.subr.mxu0 0.0
    %785 = vmatpush1.msra.mxu0 0.0
    %786 = vmatprep.subr.mxu0 0.0
    %787 = vmatpush1.msra.mxu0 0.0
    %788 = vmatprep.subr.mxu0 0.0
    %789 = vmatpush1.msra.mxu0 0.0
    %790 = vmatprep.subr.mxu0 0.0
    %791 = vmatpush1.msra.mxu0 0.0
    %792 = vmatprep.subr.mxu0 0.0
    %793 = vmatpush1.msra.mxu0 0.0
    %794 = vmatprep.subr.mxu0 0.0
    %795 = vmatpush1.msra.mxu0 0.0
    %796 = vmatprep.subr.mxu0 0.0
    %797 = vmatpush1.msra.mxu0 0.0
    %798 = vmatprep.subr.mxu0 0.0
    %799 = vmatpush1.msra.mxu0 0.0
    %800 = vmatprep.subr.mxu0 0.0
    %801 = vmatpush1.msra.mxu0 0.0
    %802 = vmatprep.subr.mxu0 0.0
    %803 = vmatpush1.msra.mxu0 0.0
    %804 = vmatprep.subr.mxu0 0.0
    %805 = vmatpush1.msra.mxu0 0.0
    %806 = vmatprep.mubr.f32.mxu0 0.0
    %807 = vmatmul.mubr.f32.gmra.mrb[0].mxu0 %v740
    %v808 = vpop.f32.mrb[0].mxu0
    %v809 = vadd.f32 %v163, %v808
    %v810 = vpop.f32.mrb[0].mxu0
    %811 = vdwg.mxu0
    %v812 = vtanh.pop %v809
    %v813 = vmul.f32 %v812, %v250
    %v814 = vsel %vm253, %v813, 0.0
    %815 = vadd.xlane.f32.xlu0 %v814
    %v816 = vpop.xlane.xlu0 %815
    %vm817 = vcmask 7168
    %v818 = vsel %vm817, %v256, %v336
    %vm819 = vcmask 15360
    %v820 = vsel %vm819, %v818, %v416
    %vm821 = vcmask 23552
    %v822 = vsel %vm821, %v820, %v496
    %vm823 = vcmask 31744
    %v824 = vsel %vm823, %v822, %v576
    %vm825 = vcmask 39936
    %v826 = vsel %vm825, %v824, %v656
    %vm827 = vcmask 48128
    %v828 = vsel %vm827, %v826, %v736
    %vm829 = vcmask 56320
    %v830 = vsel %vm829, %v828, %v816
    %vm831 = vcmask 64512
    %v832 = vsel %vm831, %v830, 0.0
    %v833 = vld [vmem:[%s2] sm:$0x3]
    %vm834 = vcmp.eq.s32.totalorder %v833, 0
    %v835 = vsel %vm834, -1e+10, %v832
    %vm836 = vcmask 1041408
    %v837 = vsel %vm836, %v835, -inf
    %838 = vmax.xlane.f32.xlu0 %v837
    %v839 = vpop.xlane.xlu0 %838
    %v840 = vsub.f32 %v835, %v839
    %v841 = vmul.f32 %v840, 1.442695
    %v842 = vpow.pop %v841
    %v843 = vsel %vm836, %v842, 0.0
    %844 = vadd.xlane.f32.xlu0 %v843
    %v845 = vpop.xlane.xlu0 %844
    %v846 = vrcp.pop %v845
    %v847 = vmul.f32 %v842, %v846
    %848 = vst [vmem:[#allocation10] sm:$0x3] %v847
    // Predicated region
    $region46: #{tpu_custom_call.1} parent=1 // pred_check
      _
    $region47: #{tpu_custom_call.1} parent=1 // pred_check_branch
      %850 = sbr.rel (0) target = $region49
    $region48: #{tpu_custom_call.1} parent=1 // pred_region
      %s852 = ssub.s32 32, 32
      %853 = vsyncadd [#allocation4], %s852
      %s855 = sshll.u32 [#allocation10], 4
      %s856 = int_to_ptr.vmem [resolvable:$true] %s855
      %858 = dma.vmem_to_hbm [thread:$0]  %s856, 32, %s7, [#allocation4]
    $region49: #{tpu_custom_call.1} parent=1 // pred_fallthru
      _
    // Predicated region
    $region50: #{tpu_custom_call.1} parent=1 // pred_check
      _
    $region51: #{tpu_custom_call.1} parent=1 // pred_check_branch
      %860 = sbr.rel (0) target = $region53
    $region52: #{tpu_custom_call.1} parent=1 // pred_region
      %861 = dma.done [#allocation4], 32
    $region53: #{tpu_custom_call.1} parent=1 // pred_fallthru
      _
    %862 = vsyncpa [#allocation3], 1
    %863 = vsyncpa [#allocation6], 1
    %864 = vsyncpa [#allocation9], 1
    %865 = vsyncpa [#allocation4], 1

</llo_original>
